<compile_context>
chip_gen: v7x
topology: tpu7x:2x2x1
jax: 0.10.0
libtpu: 0.0.40
codegen_flags: <defaults>
</compile_context>

<pallas_src>
import math

import jax
import jax.numpy as jnp
from jax.experimental import pallas as pl
from jax.experimental.pallas import tpu as pltpu

LANE = 128


def _policy_kernel(state_ref, w_ref, b_ref, out_ref):
    """state_ref: [TB, D_IN] f32, w_ref: [3, K, K] bf16, b_ref: [8, K] f32,
    out_ref: [TB, A] f32."""
    d_in = state_ref.shape[1]
    n_act = out_ref.shape[1]

    x = state_ref[...].astype(jnp.bfloat16)          # bf16 [TB, D_IN]
    b = b_ref[...]                                   # f32  [8, K] (rows 0..2 used)

    # Layer 1: relu(state @ W1 + b1) — contract only the real input rows.
    h1 = jnp.dot(x, w_ref[0, :d_in, :], preferred_element_type=jnp.float32)
    h1 = jnp.maximum(h1 + b[0:1, :], 0.0)

    # Layer 2: relu(h1 @ W2 + b2)
    h2 = jnp.dot(h1.astype(jnp.bfloat16), w_ref[1],
                 preferred_element_type=jnp.float32)
    h2 = jnp.maximum(h2 + b[1:2, :], 0.0)

    # Output head: tanh(h2 @ Wm + bm); f32 epilogue (v5e-safe), store only the
    # real action lanes.
    m = jnp.dot(h2.astype(jnp.bfloat16), w_ref[2],
                preferred_element_type=jnp.float32)
    mean = jnp.tanh(m[:, :n_act] + b[2:3, :n_act])
    out_ref[...] = mean.astype(out_ref.dtype)


def pack_params(params, num_inputs, num_actions, hidden_dim):
    """Pack the 6 small params into one bf16 weight slab + one f32 bias slab.

    Padded weight columns AND padded bias lanes are zero — this invariant is
    what makes the extra lanes a mathematical no-op (relu(0)=0, tanh(0)=0).
    """
    k = LANE * pl.cdiv(max(num_inputs, hidden_dim, num_actions), LANE)

    def pad2(w):
        return jnp.pad(w, ((0, k - w.shape[0]), (0, k - w.shape[1])))

    w_slab = jnp.stack([pad2(params["w1"]),
                        pad2(params["w2"]),
                        pad2(params["wm"])]).astype(jnp.bfloat16)   # [3, K, K]

    b_slab = jnp.zeros((8, k), jnp.float32)
    b_slab = b_slab.at[0, :hidden_dim].set(params["b1"].reshape(-1))
    b_slab = b_slab.at[1, :hidden_dim].set(params["b2"].reshape(-1))
    b_slab = b_slab.at[2, :num_actions].set(params["bm"].reshape(-1))
    return w_slab, b_slab, (num_inputs, num_actions, k)


def _pick_batch_tile(batch, tb_max):
    """Rows per tile: multiple of 8 (sublane), capped at tb_max, and chosen so
    that any batch >= 16 produces >= 2 grid tiles (keeps both v7x TCs busy)."""
    tb = 8 * pl.cdiv(pl.cdiv(batch, 2), 8)
    return max(8, min(tb_max, tb))


def deterministic_policy_forward(state, packed, *, tb_max=1024):
    """state: [B, num_inputs] f32. packed: output of pack_params()."""
    w_slab, b_slab, (num_inputs, num_actions, k) = packed
    B, d_in = state.shape
    assert d_in == num_inputs

    tb = _pick_batch_tile(B, tb_max)
    n_tiles = pl.cdiv(B, tb)          # ragged tail handled by masked stores

    return pl.pallas_call(
        _policy_kernel,
        out_shape=jax.ShapeDtypeStruct((B, num_actions), jnp.float32),
        grid_spec=pltpu.PrefetchScalarGridSpec(
            num_scalar_prefetch=0,
            grid=(n_tiles,),
            in_specs=[
                # Raw state tile; last dim == full array dim, so the narrow
                # (non-128) lane width is legal.
                pl.BlockSpec((tb, num_inputs), lambda i: (i, 0)),
                # Weight / bias slabs stay VMEM-resident across the batch grid.
                pl.BlockSpec((3, k, k), lambda i: (0, 0, 0)),
                pl.BlockSpec((8, k), lambda i: (0, 0)),
            ],
            out_specs=pl.BlockSpec((tb, num_actions), lambda i: (i, 0)),
        ),
        compiler_params=pltpu.CompilerParams(
            dimension_semantics=("parallel",)),       # megacore split on v7x
    )(state, w_slab, b_slab)


def _xavier_uniform(key, fan_in, fan_out):
    # Matches torch.nn.init.xavier_uniform_ with gain=1 (weights stored
    # transposed [in, out] relative to torch's [out, in]).
    limit = math.sqrt(6.0 / (fan_in + fan_out))
    return jax.random.uniform(key, (fan_in, fan_out), jnp.float32, -limit, limit)


def init_params(key, num_inputs, num_actions, hidden_dim):
    k1, k2, k3 = jax.random.split(key, 3)
    return {
        "w1": _xavier_uniform(k1, num_inputs, hidden_dim),
        "b1": jnp.zeros((1, hidden_dim), jnp.float32),
        "w2": _xavier_uniform(k2, hidden_dim, hidden_dim),
        "b2": jnp.zeros((1, hidden_dim), jnp.float32),
        "wm": _xavier_uniform(k3, hidden_dim, num_actions),
        "bm": jnp.zeros((1, num_actions), jnp.float32),
    }


def reference_forward(state, params):
    """Pure-JAX reference with the same bf16-matmul / f32-epilogue math."""
    bf = jnp.bfloat16
    h1 = jnp.dot(state.astype(bf), params["w1"].astype(bf),
                 preferred_element_type=jnp.float32)
    h1 = jnp.maximum(h1 + params["b1"], 0.0)
    h2 = jnp.dot(h1.astype(bf), params["w2"].astype(bf),
                 preferred_element_type=jnp.float32)
    h2 = jnp.maximum(h2 + params["b2"], 0.0)
    m = jnp.dot(h2.astype(bf), params["wm"].astype(bf),
                preferred_element_type=jnp.float32)
    return jnp.tanh(m + params["bm"])


if __name__ == "__main__":
    num_inputs, num_actions, hidden_dim = 16, 8, 32

    key = jax.random.PRNGKey(0)
    k_state, k_params, k_state2 = jax.random.split(key, 3)

    params = init_params(k_params, num_inputs, num_actions, hidden_dim)
    packed = pack_params(params, num_inputs, num_actions, hidden_dim)

    # Small batch (single grid tile).
    state = jax.random.normal(k_state, (8, num_inputs), jnp.float32)
    mean = jax.block_until_ready(deterministic_policy_forward(state, packed))
    ref = reference_forward(state, params)
    assert mean.shape == (8, num_actions)
    assert jnp.allclose(mean, ref, atol=1e-4, rtol=1e-4)

    # Larger batch that is not a tile multiple: exercises the 2-tile parallel
    # grid and the masked ragged-tail stores.
    state2 = jax.random.normal(k_state2, (300, num_inputs), jnp.float32)
    mean2 = jax.block_until_ready(deterministic_policy_forward(state2, packed))
    ref2 = reference_forward(state2, params)
    assert mean2.shape == (300, num_actions)
    assert jnp.allclose(mean2, ref2, atol=1e-4, rtol=1e-4)

    # TODO(synk): sample() uses torch's stateful .normal_ noise; the
    # deterministic forward() hot path is what is implemented as a kernel —
    # noise add/clamp would be a trivial jax.random op outside the kernel.
    print("KERNEL_OK")
</pallas_src>

<mosaic_0001>
module attributes {stable_mosaic.version = 11 : i64} {
  func.func @_policy_kernel(%arg0: i32, %arg1: memref<8x16xf32, #tpu.memory_space<vmem>>, %arg2: memref<3x128x128xbf16, #tpu.memory_space<vmem>>, %arg3: memref<8x128xf32, #tpu.memory_space<vmem>>, %arg4: memref<8x8xf32, #tpu.memory_space<vmem>>) attributes {dimension_semantics = [#tpu.dimension_semantics<parallel>], iteration_bounds = array<i64: 1>, scalar_prefetch = 0 : i64, scratch_operands = 0 : i64, tpu.core_type = #tpu.core_type<tc>, window_params = [{transform_indices = @transform_0, window_bounds = array<i64: 8, 16>}, {pipeline_mode = #tpu.pipeline_mode<synchronous>, transform_indices = @transform_1, window_bounds = array<i64: 3, 128, 128>}, {pipeline_mode = #tpu.pipeline_mode<synchronous>, transform_indices = @transform_2, window_bounds = array<i64: 8, 128>}, {transform_indices = @transform_3, window_bounds = array<i64: 8, 8>}]} {
    %c0 = arith.constant 0 : index
    %c0_0 = arith.constant 0 : index
    %0 = vector.load %arg1[%c0, %c0_0] : memref<8x16xf32, #tpu.memory_space<vmem>>, vector<8x16xf32>
    %1 = arith.truncf %0 : vector<8x16xf32> to vector<8x16xbf16>
    %c0_1 = arith.constant 0 : index
    %c0_2 = arith.constant 0 : index
    %2 = vector.load %arg3[%c0_1, %c0_2] : memref<8x128xf32, #tpu.memory_space<vmem>>, vector<8x128xf32>
    %c0_3 = arith.constant 0 : index
    %c0_4 = arith.constant 0 : index
    %c0_5 = arith.constant 0 : index
    %3 = vector.load %arg2[%c0_3, %c0_4, %c0_5] : memref<3x128x128xbf16, #tpu.memory_space<vmem>>, vector<1x16x128xbf16>
    %4 = vector.shape_cast %3 : vector<1x16x128xbf16> to vector<16x128xbf16>
    %cst = arith.constant dense<0.000000e+00> : vector<8x128xf32>
    %5 = tpu.matmul %1, %4, %cst {dimension_numbers = #tpu.dot_dimension_numbers<[1], [0], [0], [1], [0, 0, 1, 1], [], []>} : vector<8x16xbf16>, vector<16x128xbf16>, vector<8x128xf32> -> vector<8x128xf32>
    %6 = vector.extract_strided_slice %2 {offsets = [0, 0], sizes = [1, 128], strides = [1, 1]} : vector<8x128xf32> to vector<1x128xf32>
    %7 = vector.broadcast %6 : vector<1x128xf32> to vector<8x128xf32>
    %8 = arith.addf %5, %7 : vector<8x128xf32>
    %cst_6 = arith.constant 0.000000e+00 : f32
    %9 = vector.broadcast %cst_6 : f32 to vector<8x128xf32>
    %10 = arith.maximumf %8, %9 : vector<8x128xf32>
    %11 = arith.truncf %10 : vector<8x128xf32> to vector<8x128xbf16>
    %c1 = arith.constant 1 : index
    %c0_7 = arith.constant 0 : index
    %c0_8 = arith.constant 0 : index
    %12 = vector.load %arg2[%c1, %c0_7, %c0_8] : memref<3x128x128xbf16, #tpu.memory_space<vmem>>, vector<1x128x128xbf16>
    %13 = vector.shape_cast %12 : vector<1x128x128xbf16> to vector<128x128xbf16>
    %cst_9 = arith.constant dense<0.000000e+00> : vector<8x128xf32>
    %14 = tpu.matmul %11, %13, %cst_9 {dimension_numbers = #tpu.dot_dimension_numbers<[1], [0], [0], [1], [0, 0, 1, 1], [], []>} : vector<8x128xbf16>, vector<128x128xbf16>, vector<8x128xf32> -> vector<8x128xf32>
    %15 = vector.extract_strided_slice %2 {offsets = [1, 0], sizes = [1, 128], strides = [1, 1]} : vector<8x128xf32> to vector<1x128xf32>
    %16 = vector.broadcast %15 : vector<1x128xf32> to vector<8x128xf32>
    %17 = arith.addf %14, %16 : vector<8x128xf32>
    %cst_10 = arith.constant 0.000000e+00 : f32
    %18 = vector.broadcast %cst_10 : f32 to vector<8x128xf32>
    %19 = arith.maximumf %17, %18 : vector<8x128xf32>
    %20 = arith.truncf %19 : vector<8x128xf32> to vector<8x128xbf16>
    %c2 = arith.constant 2 : index
    %c0_11 = arith.constant 0 : index
    %c0_12 = arith.constant 0 : index
    %21 = vector.load %arg2[%c2, %c0_11, %c0_12] : memref<3x128x128xbf16, #tpu.memory_space<vmem>>, vector<1x128x128xbf16>
    %22 = vector.shape_cast %21 : vector<1x128x128xbf16> to vector<128x128xbf16>
    %cst_13 = arith.constant dense<0.000000e+00> : vector<8x128xf32>
    %23 = tpu.matmul %20, %22, %cst_13 {dimension_numbers = #tpu.dot_dimension_numbers<[1], [0], [0], [1], [0, 0, 1, 1], [], []>} : vector<8x128xbf16>, vector<128x128xbf16>, vector<8x128xf32> -> vector<8x128xf32>
    %24 = vector.extract_strided_slice %23 {offsets = [0, 0], sizes = [8, 8], strides = [1, 1]} : vector<8x128xf32> to vector<8x8xf32>
    %25 = vector.extract_strided_slice %2 {offsets = [2, 0], sizes = [1, 8], strides = [1, 1]} : vector<8x128xf32> to vector<1x8xf32>
    %26 = vector.broadcast %25 : vector<1x8xf32> to vector<8x8xf32>
    %27 = arith.addf %24, %26 : vector<8x8xf32>
    %28 = math.tanh %27 : vector<8x8xf32>
    %c0_14 = arith.constant 0 : index
    %c0_15 = arith.constant 0 : index
    %29 = vector.load %arg4[%c0_14, %c0_15] : memref<8x8xf32, #tpu.memory_space<vmem>>, vector<8x8xf32>
    tpu.vector_store %arg4[%c0_14, %c0_15], %28 {strides = array<i32>} : memref<8x8xf32, #tpu.memory_space<vmem>>, vector<8x8xf32>,
    return
  }
  func.func @transform_0(%arg0: i32) -> (i32, i32) {
    %c0_i32 = arith.constant 0 : i32
    %c0_i32_0 = arith.constant 0 : i32
    return %arg0, %c0_i32 : i32, i32
  }
  func.func @transform_1(%arg0: i32) -> (i32, i32, i32) {
    %c0_i32 = arith.constant 0 : i32
    %c0_i32_0 = arith.constant 0 : i32
    %c0_i32_1 = arith.constant 0 : i32
    %c0_i32_2 = arith.constant 0 : i32
    return %c0_i32, %c0_i32_0, %c0_i32_1 : i32, i32, i32
  }
  func.func @transform_2(%arg0: i32) -> (i32, i32) {
    %c0_i32 = arith.constant 0 : i32
    %c0_i32_0 = arith.constant 0 : i32
    %c0_i32_1 = arith.constant 0 : i32
    return %c0_i32, %c0_i32_0 : i32, i32
  }
  func.func @transform_3(%arg0: i32) -> (i32, i32) {
    %c0_i32 = arith.constant 0 : i32
    %c0_i32_0 = arith.constant 0 : i32
    return %arg0, %c0_i32 : i32, i32
  }
}

</mosaic_0001>

<llo_original>
// kernel: tpu_custom_call.1
$region0: #{tpu_custom_call.1}
  #allocation0 [shape = 'u32[]', space=smem, size = 0x4, offset = 0x4, fixed_abs, tag = 'smem constant byte address 0x4 - core index']
  #allocation1 [shape = 'u32[144,128]{1,0:T(1,128)}', space=vmem, size = 0x12000, scoped, tag = 'internal scratch']
  %s0 = inlined_call_operand.hbm [shape: f32[8,16], index: 0, kind: input, shape index: {}]
  %s1 = inlined_call_operand.hbm [shape: bf16[3,128,128], index: 1, kind: input, shape index: {}]
  %s2 = inlined_call_operand.hbm [shape: f32[8,128], index: 2, kind: input, shape index: {}]
  %s3 = inlined_call_operand.hbm [shape: f32[8,8], index: 3, kind: output, shape index: {}]
  %s4 = sld [smem:[#allocation0]]
  $region34: #{tpu_custom_call.1} parent=0
    _
  %s6 = ssub.s32 1, %s4
  %s7 = scalar_select 0, %s6, %s4
  $region1: #{tpu_custom_call.1} parent=0
    #allocation2 [shape = 'u8[4096]{0}', space=vmem, size = 0x1000, scoped, tag = 'input window, operand 0, single buffered']
    #allocation3 [shape = 's32[1]{0}', space=sflag, size = 0x4, scoped, tag = 'scoped memory for tpu_custom_call.1']
    #allocation4 [shape = 's32[1]{0}', space=sflag, size = 0x4, scoped, tag = 'scoped memory for tpu_custom_call.1']
    #allocation5 [shape = 'u8[98304]{0}', space=vmem, size = 0x18000, scoped, tag = 'input window, operand 1, single buffered']
    #allocation6 [shape = 's32[1]{0}', space=sflag, size = 0x4, scoped, tag = 'scoped memory for tpu_custom_call.1']
    #allocation7 [shape = 'u8[4096]{0}', space=vmem, size = 0x1000, scoped, tag = 'input window, operand 2, single buffered']
    #allocation8 [shape = 'u8[4096]{0}', space=vmem, size = 0x1000, scoped, tag = 'output window, operand 0, single buffered']
    %8 = vsyncpa [#allocation3], 0
    %9 = vsyncpa [#allocation6], 0
    %10 = vsyncpa [#allocation4], 0
    // Predicated region
    $region2: #{tpu_custom_call.1} parent=1 // pred_check
      _
    $region3: #{tpu_custom_call.1} parent=1 // pred_check_branch
      %12 = sbr.rel (0) target = $region5
    $region4: #{tpu_custom_call.1} parent=1 // pred_region
      %s14 = ssub.s32 128, 128
      %15 = vsyncadd [#allocation3], %s14
      %s17 = sshll.u32 [#allocation2], 4
      %s18 = int_to_ptr.vmem [resolvable:$true] %s17
      %20 = dma.hbm_to_vmem [thread:$0]  %s0, 128, %s18, [#allocation3]
    $region5: #{tpu_custom_call.1} parent=1 // pred_fallthru
      _
    // Predicated region
    $region6: #{tpu_custom_call.1} parent=1 // pred_check
      _
    $region7: #{tpu_custom_call.1} parent=1 // pred_check_branch
      %22 = sbr.rel (0) target = $region9
    $region8: #{tpu_custom_call.1} parent=1 // pred_region
      %s24 = ssub.s32 3072, 3072
      %25 = vsyncadd [#allocation6], %s24
      %s26 = sshll.u32 [#allocation5], 4
      %s27 = int_to_ptr.vmem [resolvable:$true] %s26
      %32 = dma.hbm_to_vmem [thread:$0]  %s1, 3072, %s27, [#allocation6], 64, 64, 4
    $region9: #{tpu_custom_call.1} parent=1 // pred_fallthru
      _
    // Predicated region
    $region10: #{tpu_custom_call.1} parent=1 // pred_check
      _
    $region11: #{tpu_custom_call.1} parent=1 // pred_check_branch
      %34 = sbr.rel (0) target = $region13
    $region12: #{tpu_custom_call.1} parent=1 // pred_region
      %s36 = ssub.s32 128, 128
      %37 = vsyncadd [#allocation6], %s36
      %s39 = sshll.u32 [#allocation7], 4
      %s40 = int_to_ptr.vmem [resolvable:$true] %s39
      %42 = dma.hbm_to_vmem [thread:$0]  %s2, 128, %s40, [#allocation6]
    $region13: #{tpu_custom_call.1} parent=1 // pred_fallthru
      _
    // Predicated region
    $region14: #{tpu_custom_call.1} parent=1 // pred_check
      _
    $region15: #{tpu_custom_call.1} parent=1 // pred_check_branch
      %44 = sbr.rel (0) target = $region17
    $region16: #{tpu_custom_call.1} parent=1 // pred_region
      %45 = dma.done [#allocation3], 128
    $region17: #{tpu_custom_call.1} parent=1 // pred_fallthru
      _
    // Predicated region
    $region18: #{tpu_custom_call.1} parent=1 // pred_check
      _
    $region19: #{tpu_custom_call.1} parent=1 // pred_check_branch
      %47 = sbr.rel (0) target = $region21
    $region20: #{tpu_custom_call.1} parent=1 // pred_region
      %48 = dma.done [#allocation6], 3072
    $region21: #{tpu_custom_call.1} parent=1 // pred_fallthru
      _
    // Predicated region
    $region22: #{tpu_custom_call.1} parent=1 // pred_check
      _
    $region23: #{tpu_custom_call.1} parent=1 // pred_check_branch
      %50 = sbr.rel (0) target = $region25
    $region24: #{tpu_custom_call.1} parent=1 // pred_region
      %51 = dma.done [#allocation6], 128
    $region25: #{tpu_custom_call.1} parent=1 // pred_fallthru
      _
    %v53 = vld [vmem:[#allocation2] sm:$0xff]
    %v54 = vpack.c.bf16 %v53, %v53
    %v55 = vld [vmem:[#allocation7] sm:$0xff]
    %v56 = vld [vmem:[#allocation5] sm:$0xf]
    %v57 = vld [vmem:[#allocation5 + $0x4] sm:$0xf]
    %v58 = vlaneseq
    %v59 = vshrl.u32 %v58, 7
    %v60 = vsub.s32 0, %v59
    %v61 = vrot.slane %v55, %v60
    %v64 = vunpack.c.l.b16 %v56
    %v65 = vunpack.c.l.b16 %v57
    %v66 = vpack.c.b16 %v65, %v64
    %vm68 = vcmask 130048
    %v70 = vsel %vm68, %v54, 0
    %72 = vmatprep.subr.bf16.mxu0 0
    %73 = vmatpush1.bf16.msra.mxu0 %v66
    %74 = vmatprep.subr.bf16.mxu0 0
    %75 = vmatpush1.bf16.msra.mxu0 0
    %76 = vmatprep.subr.bf16.mxu0 0
    %77 = vmatpush1.bf16.msra.mxu0 0
    %78 = vmatprep.subr.bf16.mxu0 0
    %79 = vmatpush1.bf16.msra.mxu0 0
    %80 = vmatprep.subr.bf16.mxu0 0
    %81 = vmatpush1.bf16.msra.mxu0 0
    %82 = vmatprep.subr.bf16.mxu0 0
    %83 = vmatpush1.bf16.msra.mxu0 0
    %84 = vmatprep.subr.bf16.mxu0 0
    %85 = vmatpush1.bf16.msra.mxu0 0
    %86 = vmatprep.subr.bf16.mxu0 0
    %87 = vmatpush1.bf16.msra.mxu0 0
    %88 = vmatprep.subr.bf16.mxu0 0
    %89 = vmatpush1.bf16.msra.mxu0 0
    %90 = vmatprep.subr.bf16.mxu0 0
    %91 = vmatpush1.bf16.msra.mxu0 0
    %92 = vmatprep.subr.bf16.mxu0 0
    %93 = vmatpush1.bf16.msra.mxu0 0
    %94 = vmatprep.subr.bf16.mxu0 0
    %95 = vmatpush1.bf16.msra.mxu0 0
    %96 = vmatprep.subr.bf16.mxu0 0
    %97 = vmatpush1.bf16.msra.mxu0 0
    %98 = vmatprep.subr.bf16.mxu0 0
    %99 = vmatpush1.bf16.msra.mxu0 0
    %100 = vmatprep.subr.bf16.mxu0 0
    %101 = vmatpush1.bf16.msra.mxu0 0
    %102 = vmatprep.subr.bf16.mxu0 0
    %103 = vmatpush1.bf16.msra.mxu0 0
    %104 = vmatprep.mubr.bf16.mxu0 0
    %105 = vmatmul.mubr.bf16.gmra.mrb[0].mxu0 %v70
    %v106 = vpop.f32.mrb[0].mxu0
    %v107 = vadd.f32 %v61, %v106
    %v108 = vpop.f32.mrb[0].mxu0
    %v109 = vpop.f32.mrb[0].mxu0
    %v110 = vpop.f32.mrb[0].mxu0
    %111 = vdwg.mxu0
    %v112 = vmax.f32 %v107, 0.0
    %v113 = vpack.c.bf16 %v112, %v112
    %s114 = scalar_lea.vmem [#allocation5], 64
    %v115 = vld [vmem:[%s114] sm:$0xf]
    %v116 = vld [vmem:[%s114 + $0x4] sm:$0xf]
    %v117 = vld [vmem:[%s114 + $0x8] sm:$0xf]
    %v118 = vld [vmem:[%s114 + $0xc] sm:$0xf]
    %v119 = vld [vmem:[%s114 + $0x10] sm:$0xf]
    %v120 = vld [vmem:[%s114 + $0x14] sm:$0xf]
    %v121 = vld [vmem:[%s114 + $0x18] sm:$0xf]
    %v122 = vld [vmem:[%s114 + $0x1c] sm:$0xf]
    %v123 = vld [vmem:[%s114 + $0x20] sm:$0xf]
    %v124 = vld [vmem:[%s114 + $0x24] sm:$0xf]
    %v125 = vld [vmem:[%s114 + $0x28] sm:$0xf]
    %v126 = vld [vmem:[%s114 + $0x2c] sm:$0xf]
    %v127 = vld [vmem:[%s114 + $0x30] sm:$0xf]
    %v128 = vld [vmem:[%s114 + $0x34] sm:$0xf]
    %v129 = vld [vmem:[%s114 + $0x38] sm:$0xf]
    %v130 = vld [vmem:[%s114 + $0x3c] sm:$0xf]
    %v131 = vlaneseq
    %v132 = vshrl.u32 %v131, 7
    %v133 = vsub.s32 1, %v132
    %v134 = vrot.slane %v55, %v133
    %v151 = vunpack.c.l.b16 %v115
    %v152 = vunpack.c.l.b16 %v116
    %v153 = vunpack.c.l.b16 %v117
    %v154 = vunpack.c.l.b16 %v118
    %v155 = vunpack.c.l.b16 %v119
    %v156 = vunpack.c.l.b16 %v120
    %v157 = vunpack.c.l.b16 %v121
    %v158 = vunpack.c.l.b16 %v122
    %v159 = vunpack.c.l.b16 %v123
    %v160 = vunpack.c.l.b16 %v124
    %v161 = vunpack.c.l.b16 %v125
    %v162 = vunpack.c.l.b16 %v126
    %v163 = vunpack.c.l.b16 %v127
    %v164 = vunpack.c.l.b16 %v128
    %v165 = vunpack.c.l.b16 %v129
    %v166 = vunpack.c.l.b16 %v130
    %v167 = vpack.c.b16 %v152, %v151
    %v168 = vpack.c.b16 %v154, %v153
    %v169 = vpack.c.b16 %v156, %v155
    %v170 = vpack.c.b16 %v158, %v157
    %v171 = vpack.c.b16 %v160, %v159
    %v172 = vpack.c.b16 %v162, %v161
    %v173 = vpack.c.b16 %v164, %v163
    %v174 = vpack.c.b16 %v166, %v165
    %183 = vmatprep.subr.bf16.mxu0 0
    %184 = vmatpush1.bf16.msra.mxu0 %v167
    %185 = vmatprep.subr.bf16.mxu0 0
    %186 = vmatpush1.bf16.msra.mxu0 %v168
    %187 = vmatprep.subr.bf16.mxu0 0
    %188 = vmatpush1.bf16.msra.mxu0 %v169
    %189 = vmatprep.subr.bf16.mxu0 0
    %190 = vmatpush1.bf16.msra.mxu0 %v170
    %191 = vmatprep.subr.bf16.mxu0 0
    %192 = vmatpush1.bf16.msra.mxu0 %v171
    %193 = vmatprep.subr.bf16.mxu0 0
    %194 = vmatpush1.bf16.msra.mxu0 %v172
    %195 = vmatprep.subr.bf16.mxu0 0
    %196 = vmatpush1.bf16.msra.mxu0 %v173
    %197 = vmatprep.subr.bf16.mxu0 0
    %198 = vmatpush1.bf16.msra.mxu0 %v174
    %199 = vmatprep.subr.bf16.mxu0 0
    %200 = vmatpush1.bf16.msra.mxu0 0
    %201 = vmatprep.subr.bf16.mxu0 0
    %202 = vmatpush1.bf16.msra.mxu0 0
    %203 = vmatprep.subr.bf16.mxu0 0
    %204 = vmatpush1.bf16.msra.mxu0 0
    %205 = vmatprep.subr.bf16.mxu0 0
    %206 = vmatpush1.bf16.msra.mxu0 0
    %207 = vmatprep.subr.bf16.mxu0 0
    %208 = vmatpush1.bf16.msra.mxu0 0
    %209 = vmatprep.subr.bf16.mxu0 0
    %210 = vmatpush1.bf16.msra.mxu0 0
    %211 = vmatprep.subr.bf16.mxu0 0
    %212 = vmatpush1.bf16.msra.mxu0 0
    %213 = vmatprep.subr.bf16.mxu0 0
    %214 = vmatpush1.bf16.msra.mxu0 0
    %215 = vmatprep.mubr.bf16.mxu0 0
    %216 = vmatmul.mubr.bf16.gmra.mrb[0].mxu0 %v113
    %v217 = vpop.f32.mrb[0].mxu0
    %v218 = vadd.f32 %v134, %v217
    %v219 = vpop.f32.mrb[0].mxu0
    %v220 = vpop.f32.mrb[0].mxu0
    %v221 = vpop.f32.mrb[0].mxu0
    %222 = vdwg.mxu0
    %v223 = vmax.f32 %v218, 0.0
    %v224 = vpack.c.bf16 %v223, %v223
    %s225 = scalar_lea.vmem [#allocation5], 128
    %v226 = vld [vmem:[%s225] sm:$0xf]
    %v227 = vld [vmem:[%s225 + $0x4] sm:$0xf]
    %v228 = vld [vmem:[%s225 + $0x8] sm:$0xf]
    %v229 = vld [vmem:[%s225 + $0xc] sm:$0xf]
    %v230 = vld [vmem:[%s225 + $0x10] sm:$0xf]
    %v231 = vld [vmem:[%s225 + $0x14] sm:$0xf]
    %v232 = vld [vmem:[%s225 + $0x18] sm:$0xf]
    %v233 = vld [vmem:[%s225 + $0x1c] sm:$0xf]
    %v234 = vld [vmem:[%s225 + $0x20] sm:$0xf]
    %v235 = vld [vmem:[%s225 + $0x24] sm:$0xf]
    %v236 = vld [vmem:[%s225 + $0x28] sm:$0xf]
    %v237 = vld [vmem:[%s225 + $0x2c] sm:$0xf]
    %v238 = vld [vmem:[%s225 + $0x30] sm:$0xf]
    %v239 = vld [vmem:[%s225 + $0x34] sm:$0xf]
    %v240 = vld [vmem:[%s225 + $0x38] sm:$0xf]
    %v241 = vld [vmem:[%s225 + $0x3c] sm:$0xf]
    %v258 = vunpack.c.l.b16 %v226
    %v259 = vunpack.c.l.b16 %v227
    %v260 = vunpack.c.l.b16 %v228
    %v261 = vunpack.c.l.b16 %v229
    %v262 = vunpack.c.l.b16 %v230
    %v263 = vunpack.c.l.b16 %v231
    %v264 = vunpack.c.l.b16 %v232
    %v265 = vunpack.c.l.b16 %v233
    %v266 = vunpack.c.l.b16 %v234
    %v267 = vunpack.c.l.b16 %v235
    %v268 = vunpack.c.l.b16 %v236
    %v269 = vunpack.c.l.b16 %v237
    %v270 = vunpack.c.l.b16 %v238
    %v271 = vunpack.c.l.b16 %v239
    %v272 = vunpack.c.l.b16 %v240
    %v273 = vunpack.c.l.b16 %v241
    %v274 = vpack.c.b16 %v259, %v258
    %v275 = vpack.c.b16 %v261, %v260
    %v276 = vpack.c.b16 %v263, %v262
    %v277 = vpack.c.b16 %v265, %v264
    %v278 = vpack.c.b16 %v267, %v266
    %v279 = vpack.c.b16 %v269, %v268
    %v280 = vpack.c.b16 %v271, %v270
    %v281 = vpack.c.b16 %v273, %v272
    %290 = vmatprep.subr.bf16.mxu0 0
    %291 = vmatpush1.bf16.msra.mxu0 %v274
    %292 = vmatprep.subr.bf16.mxu0 0
    %293 = vmatpush1.bf16.msra.mxu0 %v275
    %294 = vmatprep.subr.bf16.mxu0 0
    %295 = vmatpush1.bf16.msra.mxu0 %v276
    %296 = vmatprep.subr.bf16.mxu0 0
    %297 = vmatpush1.bf16.msra.mxu0 %v277
    %298 = vmatprep.subr.bf16.mxu0 0
    %299 = vmatpush1.bf16.msra.mxu0 %v278
    %300 = vmatprep.subr.bf16.mxu0 0
    %301 = vmatpush1.bf16.msra.mxu0 %v279
    %302 = vmatprep.subr.bf16.mxu0 0
    %303 = vmatpush1.bf16.msra.mxu0 %v280
    %304 = vmatprep.subr.bf16.mxu0 0
    %305 = vmatpush1.bf16.msra.mxu0 %v281
    %306 = vmatprep.subr.bf16.mxu0 0
    %307 = vmatpush1.bf16.msra.mxu0 0
    %308 = vmatprep.subr.bf16.mxu0 0
    %309 = vmatpush1.bf16.msra.mxu0 0
    %310 = vmatprep.subr.bf16.mxu0 0
    %311 = vmatpush1.bf16.msra.mxu0 0
    %312 = vmatprep.subr.bf16.mxu0 0
    %313 = vmatpush1.bf16.msra.mxu0 0
    %314 = vmatprep.subr.bf16.mxu0 0
    %315 = vmatpush1.bf16.msra.mxu0 0
    %316 = vmatprep.subr.bf16.mxu0 0
    %317 = vmatpush1.bf16.msra.mxu0 0
    %318 = vmatprep.subr.bf16.mxu0 0
    %319 = vmatpush1.bf16.msra.mxu0 0
    %320 = vmatprep.subr.bf16.mxu0 0
    %321 = vmatpush1.bf16.msra.mxu0 0
    %322 = vmatprep.mubr.bf16.mxu0 0
    %323 = vmatmul.mubr.bf16.gmra.mrb[0].mxu0 %v224
    %v324 = vpop.f32.mrb[0].mxu0
    %v325 = vadd.f32 0.0, %v324
    %v326 = vpop.f32.mrb[0].mxu0
    %v327 = vpop.f32.mrb[0].mxu0
    %v328 = vpop.f32.mrb[0].mxu0
    %329 = vdwg.mxu0
    %v330 = vlaneseq
    %v331 = vshrl.u32 %v330, 7
    %v332 = vsub.s32 2, %v331
    %v333 = vrot.slane %v55, %v332
    %v334 = vadd.f32 %v325, %v333
    %v335 = vtanh.pop %v334
    %vm336 = vcmask 64512
    %337 = vst.msk [vmem:[#allocation8] sm:$0xff] %vm336, %v335
    // Predicated region
    $region26: #{tpu_custom_call.1} parent=1 // pred_check
      _
    $region27: #{tpu_custom_call.1} parent=1 // pred_check_branch
      %339 = sbr.rel (0) target = $region29
    $region28: #{tpu_custom_call.1} parent=1 // pred_region
      %s341 = ssub.s32 128, 128
      %342 = vsyncadd [#allocation4], %s341
      %s344 = sshll.u32 [#allocation8], 4
      %s345 = int_to_ptr.vmem [resolvable:$true] %s344
      %347 = dma.vmem_to_hbm [thread:$0]  %s345, 128, %s3, [#allocation4]
    $region29: #{tpu_custom_call.1} parent=1 // pred_fallthru
      _
    // Predicated region
    $region30: #{tpu_custom_call.1} parent=1 // pred_check
      _
    $region31: #{tpu_custom_call.1} parent=1 // pred_check_branch
      %349 = sbr.rel (0) target = $region33
    $region32: #{tpu_custom_call.1} parent=1 // pred_region
      %350 = dma.done [#allocation4], 128
    $region33: #{tpu_custom_call.1} parent=1 // pred_fallthru
      _
    %351 = vsyncpa [#allocation3], 1
    %352 = vsyncpa [#allocation6], 1
    %353 = vsyncpa [#allocation4], 1

</llo_original>
